<compile_context>
chip_gen: v7x
topology: tpu7x:2x2x1
jax: 0.10.0
libtpu: 0.0.40
codegen_flags: <defaults>
</compile_context>

<pallas_src>
import math
import functools

import jax
import jax.numpy as jnp
from jax.experimental import pallas as pl
from jax.experimental.pallas import tpu as pltpu


# ----------------------------- Pallas kernel --------------------------------

def _propagate_kernel(p_ref, x_ref, o_ref):
    """One column tile of o = P @ x.

    p_ref : (V_pad, V_pad)  precomputed Euler propagator (VMEM-resident across grid)
    x_ref : (V_pad, TM)     node-major state tile
    o_ref : (V_pad, TM)     propagated state tile (t = time)
    """
    o_ref[...] = jnp.dot(
        p_ref[...], x_ref[...], preferred_element_type=jnp.float32
    ).astype(o_ref.dtype)


# ------------------------------ host-side math --------------------------------

def _round_up(n, m):
    return ((n + m - 1) // m) * m


def _normalize_adj(adj):
    # Same normalization MTGODE's CGP odefunc applies: sym-normalized (adj + I).
    a = adj + jnp.eye(adj.shape[0], dtype=adj.dtype)
    d = jnp.sum(a, axis=1)
    d_inv_sqrt = jnp.where(d > 0, jax.lax.rsqrt(d), 0.0)
    return (a * d_inv_sqrt[:, None]) * d_inv_sqrt[None, :]


def _euler_grid(time, step_size):
    # torchdiffeq fixed-grid constructor: t_i = i*step_size, last point clamped to `time`.
    niters = int(math.ceil(time / step_size + 1.0))
    if niters < 2:
        return 0, 0.0
    ts = [i * step_size for i in range(niters)]
    ts[-1] = time
    dts = [ts[i + 1] - ts[i] for i in range(len(ts) - 1)]
    return len(dts) - 1, dts[-1]          # (n_uniform, last_dt)


def _euler_propagator(a_norm, time, step_size, alpha):
    """Fold the whole fixed-step Euler integration of the linear ODE into a single
    (V, V) matrix P such that x(time) = P @ x(0)."""
    V = a_norm.shape[0]
    n_uniform, last_dt = _euler_grid(time, step_size)
    eye = jnp.eye(V, dtype=jnp.float32)

    c = 0.5 * alpha * step_size
    a_step = (1.0 - c) * eye + c * a_norm                 # one uniform Euler step
    if n_uniform <= 0:
        P = eye
    elif n_uniform <= 64:
        # Sequential fold: keeps float association close to step-by-step stepping.
        P = a_step
        for _ in range(n_uniform - 1):
            P = a_step @ P
    else:
        P = jnp.linalg.matrix_power(a_step, n_uniform)
    if last_dt > 0.0:                                     # clamped final (partial) step
        c_last = 0.5 * alpha * last_dt
        P = ((1.0 - c_last) * eye + c_last * a_norm) @ P
    return P


# ------------------------------ tiling policy ----------------------------------

def _vmem_capacity_bytes():
    try:
        return int(pltpu.get_tpu_info().vmem_capacity_bytes)
    except Exception:
        return 64 << 20            # conservative fallback (v7x per-core VMEM)


def _pick_tiling(v_pad, m_lane, itemsize, max_tile_m):
    """Generation-aware tile width.  Keeps 2 double-buffered input tiles + 2 output
    tiles + the resident propagator comfortably inside the scoped-VMEM limit, then
    balances the tile so the total column padding is < 128 per tile."""
    vmem_cap = _vmem_capacity_bytes()
    vmem_limit = int(min(vmem_cap // 2, 96 << 20))        # 32 MiB on v7x, 64 MiB v5e/v6e
    budget = int(0.8 * (vmem_limit - 2 * v_pad * v_pad * itemsize))
    tm_cap = max(128, (budget // (4 * v_pad * itemsize)) // 128 * 128)
    tile_m = max(128, min(max_tile_m, tm_cap))
    n_tiles = pl.cdiv(m_lane, tile_m)
    tm = _round_up(pl.cdiv(m_lane, n_tiles), 128)         # balanced: minimal padding
    return tm, n_tiles, vmem_limit


# ------------------------------ JAX wrapper ----------------------------------

@functools.partial(
    jax.jit,
    static_argnames=("time", "step_size", "alpha", "max_tile_m", "compute_dtype"),
)
def ode_block_forward(x, adj, *, time, step_size, alpha=2.0, max_tile_m=8192,
                      compute_dtype=jnp.float32):
    """ODEBlock.forward: odeint(odefunc, x, [0, time], method='euler', step_size)[-1].

    x   : (B, C, V, L) float   (batch, channels, num_nodes, seq_len)
    adj : (V, V)       float   raw adjacency (normalized here, as in the odefunc)

    compute_dtype=jnp.bfloat16 halves HBM traffic of the (mem-bound) kernel at the
    cost of ~1e-2 accuracy; default f32 matches the reference to 1e-4.
    """
    B, C, V, L = x.shape
    M = B * C * L
    in_dtype = x.dtype
    itemsize = jnp.dtype(compute_dtype).itemsize

    a_norm = _normalize_adj(adj.astype(jnp.float32))
    P = _euler_propagator(a_norm, float(time), float(step_size), float(alpha))

    # (8, 128) alignment / lane-dense stores.
    V_pad = _round_up(max(V, 8), 8)
    M_lane = _round_up(M, 128)
    TM, n_tiles, vmem_limit = _pick_tiling(V_pad, M_lane, itemsize, max_tile_m)
    M_pad = n_tiles * TM

    # (B, C, V, L) -> (V, B, C, L) -> (V, M): node-major slab so each tile is one
    # (V_pad,V_pad) @ (V_pad,TM) MXU matmul.  jnp.pad (constant 0) fuses with the
    # transpose/reshape into a single pass and keeps padded rows exactly zero
    # (padded rows must be zero so padded outputs stay finite).
    x_slab = jnp.transpose(x.astype(compute_dtype), (2, 0, 1, 3)).reshape(V, M)
    x_pad = jnp.pad(x_slab, ((0, V_pad - V), (0, M_pad - M)))
    p_pad = jnp.pad(P.astype(compute_dtype), ((0, V_pad - V), (0, V_pad - V)))

    cost = pl.CostEstimate(
        flops=2 * V_pad * V_pad * M_pad,
        bytes_accessed=2 * V_pad * M_pad * itemsize + V_pad * V_pad * itemsize,
        transcendentals=0,
    )

    out_pad = pl.pallas_call(
        _propagate_kernel,
        out_shape=jax.ShapeDtypeStruct((V_pad, M_pad), compute_dtype),
        grid=(n_tiles,),
        in_specs=[
            # Propagator: grid-invariant, stays VMEM-resident (never re-DMA'd).
            pl.BlockSpec((V_pad, V_pad), lambda j: (0, 0)),
            # State tile: auto double-buffered by the BlockSpec pipeline.
            pl.BlockSpec((V_pad, TM), lambda j: (0, j)),
        ],
        out_specs=pl.BlockSpec((V_pad, TM), lambda j: (0, j)),
        # Output aliases the padded input slab: column tiles are disjoint and each
        # tile is read before written, so this only saves an HBM allocation.
        input_output_aliases={1: 0},
        cost_estimate=cost,
        compiler_params=pltpu.CompilerParams(
            dimension_semantics=("parallel",),   # megacore sharding of the M axis
            vmem_limit_bytes=vmem_limit,
        ),
    )(p_pad, x_pad)

    # (V_pad, M_pad) -> (V, M) -> (V, B, C, L) -> (B, C, V, L)
    out = out_pad[:V, :M].reshape(V, B, C, L).transpose(1, 2, 0, 3)
    return out.astype(in_dtype)


# Pure-JAX step-by-step reference of the same forward (correctness check).
def _ode_block_ref(x, adj, *, time, step_size, alpha=2.0):
    a_norm = _normalize_adj(adj.astype(jnp.float32))
    n_uniform, last_dt = _euler_grid(float(time), float(step_size))

    def f(xx):
        ax = jnp.einsum('ncwl,vw->ncvl', xx, a_norm)
        return 0.5 * alpha * (ax - xx)

    xx = x.astype(jnp.float32)
    for _ in range(n_uniform):
        xx = xx + step_size * f(xx)
    if last_dt > 0.0:
        xx = xx + last_dt * f(xx)
    return xx.astype(x.dtype)


# --------------------------------- main ---------------------------------------

if __name__ == "__main__":
    key = jax.random.PRNGKey(0)
    k_x, k_a = jax.random.split(key)

    B, C, V, L = 2, 4, 16, 8          # batch, channels, num_nodes, seq_len
    time, step_size, alpha = 1.0, 0.25, 2.0

    x = jax.random.normal(k_x, (B, C, V, L), dtype=jnp.float32)
    adj_raw = jax.random.uniform(k_a, (V, V), dtype=jnp.float32)
    adj = 0.5 * (adj_raw + adj_raw.T)  # symmetric non-negative adjacency

    out = ode_block_forward(x, adj, time=time, step_size=step_size, alpha=alpha)
    out = jax.block_until_ready(out)

    ref = _ode_block_ref(x, adj, time=time, step_size=step_size, alpha=alpha)
    if not jnp.allclose(out, ref, atol=1e-4, rtol=1e-4):
        raise AssertionError("Pallas ODEBlock output does not match JAX reference")

    print("KERNEL_OK")
</pallas_src>

<mosaic_0001>
module attributes {stable_mosaic.version = 11 : i64} {
  func.func @_propagate_kernel(%arg0: i32, %arg1: memref<16x16xf32, #tpu.memory_space<vmem>>, %arg2: memref<16x128xf32, #tpu.memory_space<vmem>>, %arg3: memref<16x128xf32, #tpu.memory_space<vmem>>) attributes {dimension_semantics = [#tpu.dimension_semantics<parallel>], iteration_bounds = array<i64: 1>, scalar_prefetch = 0 : i64, scratch_operands = 0 : i64, tpu.core_type = #tpu.core_type<tc>, window_params = [{pipeline_mode = #tpu.pipeline_mode<synchronous>, transform_indices = @transform_0, window_bounds = array<i64: 16, 16>}, {transform_indices = @transform_1, window_bounds = array<i64: 16, 128>}, {transform_indices = @transform_2, window_bounds = array<i64: 16, 128>}]} {
    %c0 = arith.constant 0 : index
    %c0_0 = arith.constant 0 : index
    %0 = vector.load %arg1[%c0, %c0_0] : memref<16x16xf32, #tpu.memory_space<vmem>>, vector<16x16xf32>
    %c0_1 = arith.constant 0 : index
    %c0_2 = arith.constant 0 : index
    %1 = vector.load %arg2[%c0_1, %c0_2] : memref<16x128xf32, #tpu.memory_space<vmem>>, vector<16x128xf32>
    %cst = arith.constant dense<0.000000e+00> : vector<16x128xf32>
    %2 = tpu.matmul %0, %1, %cst {dimension_numbers = #tpu.dot_dimension_numbers<[1], [0], [0], [1], [0, 0, 1, 1], [], []>} : vector<16x16xf32>, vector<16x128xf32>, vector<16x128xf32> -> vector<16x128xf32>
    %c0_3 = arith.constant 0 : index
    %c0_4 = arith.constant 0 : index
    %3 = vector.load %arg3[%c0_3, %c0_4] : memref<16x128xf32, #tpu.memory_space<vmem>>, vector<16x128xf32>
    tpu.vector_store %arg3[%c0_3, %c0_4], %2 {strides = array<i32>} : memref<16x128xf32, #tpu.memory_space<vmem>>, vector<16x128xf32>,
    return
  }
  func.func @transform_0(%arg0: i32) -> (i32, i32) {
    %c0_i32 = arith.constant 0 : i32
    %c0_i32_0 = arith.constant 0 : i32
    %c0_i32_1 = arith.constant 0 : i32
    return %c0_i32, %c0_i32_0 : i32, i32
  }
  func.func @transform_1(%arg0: i32) -> (i32, i32) {
    %c0_i32 = arith.constant 0 : i32
    %c0_i32_0 = arith.constant 0 : i32
    return %c0_i32, %arg0 : i32, i32
  }
  func.func @transform_2(%arg0: i32) -> (i32, i32) {
    %c0_i32 = arith.constant 0 : i32
    %c0_i32_0 = arith.constant 0 : i32
    return %c0_i32, %arg0 : i32, i32
  }
}

</mosaic_0001>

<llo_original>
// kernel: ode_block_forward.1
$region0: #{ode_block_forward.1}
  #allocation0 [shape = 'u32[]', space=smem, size = 0x4, offset = 0x4, fixed_abs, tag = 'smem constant byte address 0x4 - core index']
  #allocation1 [shape = 'u32[144,128]{1,0:T(1,128)}', space=vmem, size = 0x12000, scoped, tag = 'internal scratch']
  %s0 = inlined_call_operand.vmem [shape: f32[16,16], index: 0, kind: input, shape index: {}]
  %s1 = inlined_call_operand.vmem [shape: f32[16,128], index: 1, kind: input, shape index: {}, may-alias: {1,2}]
  %s2 = inlined_call_operand.vmem [shape: f32[16,128], index: 2, kind: output, shape index: {}, may-alias: {1,2}]
  %s3 = sld [smem:[#allocation0]]
  $region18: #{ode_block_forward.1} parent=0
    _
  %s5 = ssub.s32 1, %s3
  %s6 = scalar_select 0, %s5, %s3
  // Predicated region
  $region2: #{ode_block_forward.1} parent=0 // pred_check
    _
  $region3: #{ode_block_forward.1} parent=0 // pred_check_branch
    %8 = sbr.rel (0) target = $region5
  $region4: #{ode_block_forward.1} parent=0 // pred_region
    _
  $region5: #{ode_block_forward.1} parent=0 // pred_fallthru
    _
  // Predicated region
  $region6: #{ode_block_forward.1} parent=0 // pred_check
    _
  $region7: #{ode_block_forward.1} parent=0 // pred_check_branch
    %10 = sbr.rel (0) target = $region9
  $region8: #{ode_block_forward.1} parent=0 // pred_region
    _
  $region9: #{ode_block_forward.1} parent=0 // pred_fallthru
    _
  %v11 = vld [vmem:[%s0] sm:$0xff]
  %v12 = vld [vmem:[%s0 + $0x8] sm:$0xff]
  %v13 = vld [vmem:[%s1] sm:$0xff]
  %v14 = vld [vmem:[%s1 + $0x8] sm:$0xff]
  %vm15 = vcmask 130048
  %v17 = vsel %vm15, %v11, 0
  %v20 = vsel %vm15, %v12, 0
  %22 = vmatprep.subr.mxu0 0.0
  %23 = vmatpush1.msra.mxu0 %v13
  %24 = vmatprep.subr.mxu0 0.0
  %25 = vmatpush1.msra.mxu0 %v14
  %26 = vmatprep.subr.mxu0 0.0
  %27 = vmatpush1.msra.mxu0 0.0
  %28 = vmatprep.subr.mxu0 0.0
  %29 = vmatpush1.msra.mxu0 0.0
  %30 = vmatprep.subr.mxu0 0.0
  %31 = vmatpush1.msra.mxu0 0.0
  %32 = vmatprep.subr.mxu0 0.0
  %33 = vmatpush1.msra.mxu0 0.0
  %34 = vmatprep.subr.mxu0 0.0
  %35 = vmatpush1.msra.mxu0 0.0
  %36 = vmatprep.subr.mxu0 0.0
  %37 = vmatpush1.msra.mxu0 0.0
  %38 = vmatprep.subr.mxu0 0.0
  %39 = vmatpush1.msra.mxu0 0.0
  %40 = vmatprep.subr.mxu0 0.0
  %41 = vmatpush1.msra.mxu0 0.0
  %42 = vmatprep.subr.mxu0 0.0
  %43 = vmatpush1.msra.mxu0 0.0
  %44 = vmatprep.subr.mxu0 0.0
  %45 = vmatpush1.msra.mxu0 0.0
  %46 = vmatprep.subr.mxu0 0.0
  %47 = vmatpush1.msra.mxu0 0.0
  %48 = vmatprep.subr.mxu0 0.0
  %49 = vmatpush1.msra.mxu0 0.0
  %50 = vmatprep.subr.mxu0 0.0
  %51 = vmatpush1.msra.mxu0 0.0
  %52 = vmatprep.subr.mxu0 0.0
  %53 = vmatpush1.msra.mxu0 0.0
  %54 = vmatprep.subr.mxu0 0.0
  %55 = vmatpush1.msra.mxu0 0.0
  %56 = vmatprep.subr.mxu0 0.0
  %57 = vmatpush1.msra.mxu0 0.0
  %58 = vmatprep.subr.mxu0 0.0
  %59 = vmatpush1.msra.mxu0 0.0
  %60 = vmatprep.subr.mxu0 0.0
  %61 = vmatpush1.msra.mxu0 0.0
  %62 = vmatprep.subr.mxu0 0.0
  %63 = vmatpush1.msra.mxu0 0.0
  %64 = vmatprep.subr.mxu0 0.0
  %65 = vmatpush1.msra.mxu0 0.0
  %66 = vmatprep.subr.mxu0 0.0
  %67 = vmatpush1.msra.mxu0 0.0
  %68 = vmatprep.subr.mxu0 0.0
  %69 = vmatpush1.msra.mxu0 0.0
  %70 = vmatprep.subr.mxu0 0.0
  %71 = vmatpush1.msra.mxu0 0.0
  %72 = vmatprep.subr.mxu0 0.0
  %73 = vmatpush1.msra.mxu0 0.0
  %74 = vmatprep.subr.mxu0 0.0
  %75 = vmatpush1.msra.mxu0 0.0
  %76 = vmatprep.subr.mxu0 0.0
  %77 = vmatpush1.msra.mxu0 0.0
  %78 = vmatprep.subr.mxu0 0.0
  %79 = vmatpush1.msra.mxu0 0.0
  %80 = vmatprep.subr.mxu0 0.0
  %81 = vmatpush1.msra.mxu0 0.0
  %82 = vmatprep.subr.mxu0 0.0
  %83 = vmatpush1.msra.mxu0 0.0
  %84 = vmatprep.subr.mxu0 0.0
  %85 = vmatpush1.msra.mxu0 0.0
  %86 = vmatprep.mubr.f32.mxu0 0.0
  %87 = vmatmul.mubr.f32.gmra.mrb[0].mxu0 %v17
  %v88 = vpop.f32.mrb[0].mxu0
  %v89 = vadd.f32 0.0, %v88
  %v90 = vpop.f32.mrb[0].mxu0
  %91 = vmatprep.mubr.f32.mxu0 0.0
  %92 = vmatmul.mubr.f32.gmra.mrb[0].mxu0 %v20
  %v93 = vpop.f32.mrb[0].mxu0
  %v94 = vadd.f32 0.0, %v93
  %v95 = vpop.f32.mrb[0].mxu0
  %96 = vdwg.mxu0
  %97 = vst [vmem:[%s2] sm:$0xff] %v89
  %98 = vst [vmem:[%s2 + $0x8] sm:$0xff] %v94
  // Predicated region
  $region10: #{ode_block_forward.1} parent=0 // pred_check
    _
  $region11: #{ode_block_forward.1} parent=0 // pred_check_branch
    %100 = sbr.rel (0) target = $region13
  $region12: #{ode_block_forward.1} parent=0 // pred_region
    _
  $region13: #{ode_block_forward.1} parent=0 // pred_fallthru
    _
  // Predicated region
  $region14: #{ode_block_forward.1} parent=0 // pred_check
    _
  $region15: #{ode_block_forward.1} parent=0 // pred_check_branch
    %102 = sbr.rel (0) target = $region17
  $region16: #{ode_block_forward.1} parent=0 // pred_region
    _
  $region17: #{ode_block_forward.1} parent=0 // pred_fallthru
    _

</llo_original>
